<compile_context>
chip_gen: v6e
topology: v6e:2x2x1
jax: 0.10.0
libtpu: 0.0.40
codegen_flags: <defaults>
</compile_context>

<pallas_src>
import functools

import jax
import jax.numpy as jnp
import numpy as np
from jax.experimental import pallas as pl
from jax.experimental.pallas import tpu as pltpu

B, K, N = 5, 10, 10          # weight1: (B, K, N)
NP = 16                      # N padded to a multiple of 8 -> sublane-aligned groups
LANE = 128


def model1d_kernel(x_ref, w_ref, out_ref, *, n_sub, tsub):
    # x_ref  : (B*K, TM)      x with M on the lane axis
    # w_ref  : (B*NP, B*K)    block-diagonal weight, resident across the grid
    # out_ref: (B, TM)        lane-dense output tile
    w = w_ref[...]                                                    # (80, 50), tiny
    for c in range(n_sub):                                            # static unroll (<=16)
        sl = pl.ds(c * tsub, tsub)                                    # 128-aligned lane slice
        x_sub = x_ref[:, sl]                                          # (B*K, tsub)
        # One MXU matmul performs all 5 batched (10x10) contractions at once.
        y = jnp.dot(w, x_sub, preferred_element_type=jnp.float32)     # (B*NP, tsub)
        t = jnp.tanh(y)                                               # EUP; tanh(0)=0 on pad rows
        s = jnp.sum(t.reshape(B, NP, tsub), axis=1)                   # grouped sublane reduce
        out_ref[:, sl] = s.astype(out_ref.dtype)                      # lane-dense store


@functools.partial(jax.jit, static_argnames=("tm",))
def model1d_forward(x, weight1, *, tm=2048):
    """x: (B, M, K) f32, weight1: (B, K, N) f32 -> (M, B) f32 (matches PyTorch)."""
    Bx, M, Kx = x.shape
    _, Kw, Nx = weight1.shape
    assert (Bx, Kx, Kw, Nx) == (B, K, K, N)

    # Block-diagonal weight: w_bd[b*NP+n, c*K+k] = weight1[b, k, n] * (b == c).  (80, 50)
    w_t = jnp.pad(jnp.transpose(weight1, (0, 2, 1)), ((0, 0), (0, NP - N), (0, 0)))   # (B,NP,K)
    eye = jnp.eye(B, dtype=weight1.dtype)
    w_bd = jnp.einsum("bnk,bc->bnck", w_t, eye).reshape(B * NP, B * K)

    # M onto the lane axis (free reshape after the transpose).
    # TODO(synk): this transpose is one extra HBM round-trip of x; if the producer can
    # emit/cache x in (B, K, M) layout, feed it straight through and drop this line.
    x_km = jnp.transpose(x, (0, 2, 1)).reshape(B * K, M)                               # (50, M)

    # Tile selection: big lane tiles (multiple of 128, up to `tm`), but keep >= 2 grid
    # tiles when M > 128 so v7x's two TensorCores both get work.  No padding of x: the
    # ragged last tile is masked by Pallas (OOB input lanes are garbage, OOB stores dropped).
    if M <= LANE:
        TM = M                                           # single full-width block
    else:
        TM = max(LANE, min(tm, (M // 2) // LANE * LANE))
    n_tiles = pl.cdiv(M, TM)
    if TM % 512 == 0:
        TSUB = 512
    elif TM % 256 == 0:
        TSUB = 256
    elif TM % LANE == 0:
        TSUB = LANE
    else:
        TSUB = TM                                        # small-M single block
    n_sub = TM // TSUB

    x_spec_kwargs = {}
    if n_tiles >= 3:
        # HBM-bound on the MXU path -> deeper buffering hides DMA issue latency.
        x_spec_kwargs["pipeline_mode"] = pl.Buffered(3)

    cost = pl.CostEstimate(
        flops=2 * (B * NP) * (B * K) * M + 2 * B * NP * M,
        transcendentals=B * NP * M,
        bytes_accessed=4 * (B * K * M + (B * NP) * (B * K) + B * M),
    )

    out_bm = pl.pallas_call(
        functools.partial(model1d_kernel, n_sub=n_sub, tsub=TSUB),
        out_shape=jax.ShapeDtypeStruct((B, M), jnp.float32),
        grid_spec=pltpu.PrefetchScalarGridSpec(
            num_scalar_prefetch=0,
            grid=(n_tiles,),
            in_specs=[
                pl.BlockSpec((B * K, TM), lambda i: (0, i), **x_spec_kwargs),   # stream M tiles
                pl.BlockSpec((B * NP, B * K), lambda i: (0, 0)),                # weight resident
            ],
            out_specs=pl.BlockSpec((B, TM), lambda i: (0, i)),
        ),
        compiler_params=pltpu.CompilerParams(dimension_semantics=("parallel",)),
        cost_estimate=cost,
    )(x_km, w_bd)

    # Layout fix-up to match PyTorch's (M, B); in-kernel store stays lane-dense (B, TM).
    return out_bm.T


def init_params(key):
    # Deterministic stand-in for torch.nn.init.kaiming_normal_ on (5, 10, 10):
    # fan_in = 10*10 = 100, gain = sqrt(2) -> std = sqrt(2/100).
    k_w, k_b = jax.random.split(key)
    weight1 = jax.random.normal(k_w, (B, K, N), jnp.float32) * np.sqrt(2.0 / (K * N))
    bias1 = jax.random.normal(k_b, (N,), jnp.float32)   # unused in forward (matches PyTorch)
    return weight1, bias1


def reference(x, w):
    x64 = np.asarray(x, np.float64)
    w64 = np.asarray(w, np.float64)
    return np.tanh(np.einsum("bmk,bkn->bmn", x64, w64)).sum(axis=2).T   # (M, B)


if __name__ == "__main__":
    key = jax.random.PRNGKey(0)
    k_p, *k_xs = jax.random.split(key, 4)
    weight1, _bias1 = init_params(k_p)

    # M=8   : single small full-width block.
    # M=300 : multi-tile grid (TM=128, 3 tiles) + ragged last tile (no padding).
    # M=4352: big tiles (TM=2048, 512-lane sub-chunks), Buffered(3), ragged last tile.
    for k_x, M in zip(k_xs, (8, 300, 4352)):
        x = jax.random.normal(k_x, (B, M, K), jnp.float32)
        out = jax.block_until_ready(model1d_forward(x, weight1))
        assert out.shape == (M, B)
        # The MXU may implement the f32 matmul as multi-pass bf16 internally, so allow a
        # small drift vs the float64 numpy reference (review: "re-validate tolerances").
        np.testing.assert_allclose(np.asarray(out), reference(x, weight1),
                                   rtol=5e-4, atol=5e-4)

    print("KERNEL_OK")
</pallas_src>

<mosaic_0001>
module attributes {stable_mosaic.version = 11 : i64} {
  func.func @model1d_kernel(%arg0: i32, %arg1: memref<50x8xf32, #tpu.memory_space<vmem>>, %arg2: memref<80x50xf32, #tpu.memory_space<vmem>>, %arg3: memref<5x8xf32, #tpu.memory_space<vmem>>) attributes {dimension_semantics = [#tpu.dimension_semantics<parallel>], iteration_bounds = array<i64: 1>, scalar_prefetch = 0 : i64, scratch_operands = 0 : i64, tpu.core_type = #tpu.core_type<tc>, window_params = [{transform_indices = @transform_0, window_bounds = array<i64: 50, 8>}, {pipeline_mode = #tpu.pipeline_mode<synchronous>, transform_indices = @transform_1, window_bounds = array<i64: 80, 50>}, {transform_indices = @transform_2, window_bounds = array<i64: 5, 8>}]} {
    %c0 = arith.constant 0 : index
    %c0_0 = arith.constant 0 : index
    %0 = vector.load %arg2[%c0, %c0_0] : memref<80x50xf32, #tpu.memory_space<vmem>>, vector<80x50xf32>
    %c0_1 = arith.constant 0 : index
    %c0_2 = arith.constant 0 : index
    %1 = vector.load %arg1[%c0_1, %c0_2] : memref<50x8xf32, #tpu.memory_space<vmem>>, vector<50x8xf32>
    %cst = arith.constant dense<0.000000e+00> : vector<80x8xf32>
    %2 = tpu.matmul %0, %1, %cst {dimension_numbers = #tpu.dot_dimension_numbers<[1], [0], [0], [1], [0, 0, 1, 1], [], []>} : vector<80x50xf32>, vector<50x8xf32>, vector<80x8xf32> -> vector<80x8xf32>
    %3 = math.tanh %2 : vector<80x8xf32>
    %4 = vector.shape_cast %3 : vector<80x8xf32> to vector<5x16x8xf32>
    %cst_3 = arith.constant dense<0.000000e+00> : vector<5x8xf32>
    %5 = vector.multi_reduction <add>, %4, %cst_3 [1] : vector<5x16x8xf32> to vector<5x8xf32>
    %c0_4 = arith.constant 0 : index
    %c0_5 = arith.constant 0 : index
    %6 = vector.load %arg3[%c0_4, %c0_5] : memref<5x8xf32, #tpu.memory_space<vmem>>, vector<5x8xf32>
    tpu.vector_store %arg3[%c0_4, %c0_5], %5 {strides = array<i32>} : memref<5x8xf32, #tpu.memory_space<vmem>>, vector<5x8xf32>,
    return
  }
  func.func @transform_0(%arg0: i32) -> (i32, i32) {
    %c0_i32 = arith.constant 0 : i32
    %c0_i32_0 = arith.constant 0 : i32
    return %c0_i32, %arg0 : i32, i32
  }
  func.func @transform_1(%arg0: i32) -> (i32, i32) {
    %c0_i32 = arith.constant 0 : i32
    %c0_i32_0 = arith.constant 0 : i32
    %c0_i32_1 = arith.constant 0 : i32
    return %c0_i32, %c0_i32_0 : i32, i32
  }
  func.func @transform_2(%arg0: i32) -> (i32, i32) {
    %c0_i32 = arith.constant 0 : i32
    %c0_i32_0 = arith.constant 0 : i32
    return %c0_i32, %arg0 : i32, i32
  }
}

</mosaic_0001>

<llo_original>
// kernel: model1d_forward.1
$region0: #{model1d_forward.1}
  #allocation0 [shape = 'u32[]', space=smem, size = 0x4, offset = 0x4, fixed_abs, tag = 'smem constant byte address 0x4 - core index']
  #allocation1 [shape = 'u32[144,128]{1,0:T(1,128)}', space=vmem, size = 0x12000, scoped, tag = 'internal scratch']
  %s0 = inlined_call_operand.vmem [shape: f32[50,8], index: 0, kind: input, shape index: {}]
  %s1 = inlined_call_operand.vmem [shape: f32[80,50], index: 1, kind: input, shape index: {}]
  %s2 = inlined_call_operand.vmem [shape: f32[5,8], index: 2, kind: output, shape index: {}]
  %s3 = sld [smem:[#allocation0]]
  $region18: #{model1d_forward.1} parent=0
    _
  %s5 = ssub.s32 1, %s3
  %s6 = scalar_select 0, %s5, %s3
  // Predicated region
  $region2: #{model1d_forward.1} parent=0 // pred_check
    _
  $region3: #{model1d_forward.1} parent=0 // pred_check_branch
    %8 = sbr.rel (0) target = $region5
  $region4: #{model1d_forward.1} parent=0 // pred_region
    _
  $region5: #{model1d_forward.1} parent=0 // pred_fallthru
    _
  // Predicated region
  $region6: #{model1d_forward.1} parent=0 // pred_check
    _
  $region7: #{model1d_forward.1} parent=0 // pred_check_branch
    %10 = sbr.rel (0) target = $region9
  $region8: #{model1d_forward.1} parent=0 // pred_region
    _
  $region9: #{model1d_forward.1} parent=0 // pred_fallthru
    _
  %v11 = vld [vmem:[%s1] sm:$0xff]
  %v12 = vld [vmem:[%s1 + $0x8] sm:$0xff]
  %v13 = vld [vmem:[%s1 + $0x10] sm:$0xff]
  %v14 = vld [vmem:[%s1 + $0x18] sm:$0xff]
  %v15 = vld [vmem:[%s1 + $0x20] sm:$0xff]
  %v16 = vld [vmem:[%s1 + $0x28] sm:$0xff]
  %v17 = vld [vmem:[%s1 + $0x30] sm:$0xff]
  %v18 = vld [vmem:[%s1 + $0x38] sm:$0xff]
  %v19 = vld [vmem:[%s1 + $0x40] sm:$0xff]
  %v20 = vld [vmem:[%s1 + $0x48] sm:$0xff]
  %v21 = vld [vmem:[%s0] sm:$0xff]
  %v22 = vld [vmem:[%s0 + $0x8] sm:$0xff]
  %v23 = vld [vmem:[%s0 + $0x10] sm:$0xff]
  %v24 = vld [vmem:[%s0 + $0x18] sm:$0xff]
  %v25 = vld [vmem:[%s0 + $0x20] sm:$0xff]
  %v26 = vld [vmem:[%s0 + $0x28] sm:$0xff]
  %v27 = vld [vmem:[%s0 + $0x30] sm:$0x3]
  %vm28 = vcmask 408576
  %v30 = vsel %vm28, %v11, 0
  %v33 = vsel %vm28, %v12, 0
  %v36 = vsel %vm28, %v13, 0
  %v39 = vsel %vm28, %v14, 0
  %v42 = vsel %vm28, %v15, 0
  %v45 = vsel %vm28, %v16, 0
  %v48 = vsel %vm28, %v17, 0
  %v51 = vsel %vm28, %v18, 0
  %v54 = vsel %vm28, %v19, 0
  %v57 = vsel %vm28, %v20, 0
  %vm59 = vcmask 1041408
  %v61 = vsel %vm59, %v27, 0
  %63 = vmatprep.subr.mxu0 0.0
  %64 = vmatpush1.msra.mxu0 0.0
  %65 = vmatprep.subr.mxu0 0.0
  %66 = vmatpush1.msra.mxu0 0.0
  %67 = vmatprep.subr.mxu0 0.0
  %68 = vmatpush1.msra.mxu0 0.0
  %69 = vmatprep.subr.mxu0 0.0
  %70 = vmatpush1.msra.mxu0 0.0
  %71 = vmatprep.subr.mxu0 0.0
  %72 = vmatpush1.msra.mxu0 0.0
  %73 = vmatprep.subr.mxu0 0.0
  %74 = vmatpush1.msra.mxu0 0.0
  %75 = vmatprep.subr.mxu0 0.0
  %76 = vmatpush1.msra.mxu0 0.0
  %77 = vmatprep.subr.mxu0 0.0
  %78 = vmatpush1.msra.mxu0 0.0
  %79 = vmatprep.subr.mxu0 0.0
  %80 = vmatpush1.msra.mxu0 0.0
  %81 = vmatprep.subr.mxu0 0.0
  %82 = vmatpush1.msra.mxu0 %v61
  %83 = vmatprep.subr.mxu0 0.0
  %84 = vmatpush1.msra.mxu0 %v26
  %85 = vmatprep.subr.mxu0 0.0
  %86 = vmatpush1.msra.mxu0 %v25
  %87 = vmatprep.subr.mxu0 0.0
  %88 = vmatpush1.msra.mxu0 %v24
  %89 = vmatprep.subr.mxu0 0.0
  %90 = vmatpush1.msra.mxu0 %v23
  %91 = vmatprep.subr.mxu0 0.0
  %92 = vmatpush1.msra.mxu0 %v22
  %93 = vmatprep.subr.mxu0 0.0
  %94 = vmatpush1.msra.mxu0 %v21
  %95 = vmatprep.subr.mxu0 0.0
  %96 = vmatpush2.msra.mxu0 0.0
  %97 = vmatprep.subr.mxu0 0.0
  %98 = vmatpush2.msra.mxu0 0.0
  %99 = vmatprep.subr.mxu0 0.0
  %100 = vmatpush2.msra.mxu0 0.0
  %101 = vmatprep.subr.mxu0 0.0
  %102 = vmatpush2.msra.mxu0 0.0
  %103 = vmatprep.subr.mxu0 0.0
  %104 = vmatpush2.msra.mxu0 0.0
  %105 = vmatprep.subr.mxu0 0.0
  %106 = vmatpush2.msra.mxu0 0.0
  %107 = vmatprep.subr.mxu0 0.0
  %108 = vmatpush2.msra.mxu0 0.0
  %109 = vmatprep.subr.mxu0 0.0
  %110 = vmatpush2.msra.mxu0 0.0
  %111 = vmatprep.subr.mxu0 0.0
  %112 = vmatpush2.msra.mxu0 0.0
  %113 = vmatprep.subr.mxu0 0.0
  %114 = vmatpush2.msra.mxu0 0.0
  %115 = vmatprep.subr.mxu0 0.0
  %116 = vmatpush2.msra.mxu0 0.0
  %117 = vmatprep.subr.mxu0 0.0
  %118 = vmatpush2.msra.mxu0 0.0
  %119 = vmatprep.subr.mxu0 0.0
  %120 = vmatpush2.msra.mxu0 0.0
  %121 = vmatprep.subr.mxu0 0.0
  %122 = vmatpush2.msra.mxu0 0.0
  %123 = vmatprep.subr.mxu0 0.0
  %124 = vmatpush2.msra.mxu0 0.0
  %125 = vmatprep.subr.mxu0 0.0
  %126 = vmatpush2.msra.mxu0 0.0
  %127 = vmatprep.mubr.f32.mxu0 0.0
  %128 = vmatmul.mubr.f32.gmra.mxu0 %v30
  %v129 = vpop.f32.mrf.mxu0
  %v130 = vadd.f32 0.0, %v129
  %v131 = vpop.f32.mrf.mxu0
  %132 = vmatprep.mubr.f32.mxu0 0.0
  %133 = vmatmul.mubr.f32.gmra.mxu0 %v33
  %v134 = vpop.f32.mrf.mxu0
  %v135 = vadd.f32 0.0, %v134
  %v136 = vpop.f32.mrf.mxu0
  %137 = vmatprep.mubr.f32.mxu0 0.0
  %138 = vmatmul.mubr.f32.gmra.mxu0 %v36
  %v139 = vpop.f32.mrf.mxu0
  %v140 = vadd.f32 0.0, %v139
  %v141 = vpop.f32.mrf.mxu0
  %142 = vmatprep.mubr.f32.mxu0 0.0
  %143 = vmatmul.mubr.f32.gmra.mxu0 %v39
  %v144 = vpop.f32.mrf.mxu0
  %v145 = vadd.f32 0.0, %v144
  %v146 = vpop.f32.mrf.mxu0
  %147 = vmatprep.mubr.f32.mxu0 0.0
  %148 = vmatmul.mubr.f32.gmra.mxu0 %v42
  %v149 = vpop.f32.mrf.mxu0
  %v150 = vadd.f32 0.0, %v149
  %v151 = vpop.f32.mrf.mxu0
  %152 = vmatprep.mubr.f32.mxu0 0.0
  %153 = vmatmul.mubr.f32.gmra.mxu0 %v45
  %v154 = vpop.f32.mrf.mxu0
  %v155 = vadd.f32 0.0, %v154
  %v156 = vpop.f32.mrf.mxu0
  %157 = vmatprep.mubr.f32.mxu0 0.0
  %158 = vmatmul.mubr.f32.gmra.mxu0 %v48
  %v159 = vpop.f32.mrf.mxu0
  %v160 = vadd.f32 0.0, %v159
  %v161 = vpop.f32.mrf.mxu0
  %162 = vmatprep.mubr.f32.mxu0 0.0
  %163 = vmatmul.mubr.f32.gmra.mxu0 %v51
  %v164 = vpop.f32.mrf.mxu0
  %v165 = vadd.f32 0.0, %v164
  %v166 = vpop.f32.mrf.mxu0
  %167 = vmatprep.mubr.f32.mxu0 0.0
  %168 = vmatmul.mubr.f32.gmra.mxu0 %v54
  %v169 = vpop.f32.mrf.mxu0
  %v170 = vadd.f32 0.0, %v169
  %v171 = vpop.f32.mrf.mxu0
  %172 = vmatprep.mubr.f32.mxu0 0.0
  %173 = vmatmul.mubr.f32.gmra.mxu0 %v57
  %v174 = vpop.f32.mrf.mxu0
  %v175 = vadd.f32 0.0, %v174
  %v176 = vpop.f32.mrf.mxu0
  %177 = vdwg.mxu0
  %v178 = vtanh.pop %v130
  %v179 = vtanh.pop %v135
  %v180 = vtanh.pop %v140
  %v181 = vtanh.pop %v145
  %v182 = vtanh.pop %v150
  %v183 = vtanh.pop %v155
  %v184 = vtanh.pop %v160
  %v185 = vtanh.pop %v165
  %v186 = vtanh.pop %v170
  %v187 = vtanh.pop %v175
  %vm188 = vcmask 64512
  %v189 = vsel %vm188, %v178, 0.0
  %v190 = vsel %vm188, %v179, 0.0
  %v191 = vadd.f32 %v189, %v190
  %v192 = vrot.slane %v191, 4
  %v193 = vadd.f32 %v191, %v192
  %v194 = vrot.slane %v193, 2
  %v195 = vadd.f32 %v193, %v194
  %v196 = vrot.slane %v195, 1
  %v197 = vadd.f32 %v195, %v196
  %v198 = vsel %vm188, %v180, 0.0
  %v199 = vsel %vm188, %v181, 0.0
  %v200 = vadd.f32 %v198, %v199
  %v201 = vrot.slane %v200, 4
  %v202 = vadd.f32 %v200, %v201
  %v203 = vrot.slane %v202, 2
  %v204 = vadd.f32 %v202, %v203
  %v205 = vrot.slane %v204, 1
  %v206 = vadd.f32 %v204, %v205
  %v207 = vsel %vm188, %v182, 0.0
  %v208 = vsel %vm188, %v183, 0.0
  %v209 = vadd.f32 %v207, %v208
  %v210 = vrot.slane %v209, 4
  %v211 = vadd.f32 %v209, %v210
  %v212 = vrot.slane %v211, 2
  %v213 = vadd.f32 %v211, %v212
  %v214 = vrot.slane %v213, 1
  %v215 = vadd.f32 %v213, %v214
  %v216 = vsel %vm188, %v184, 0.0
  %v217 = vsel %vm188, %v185, 0.0
  %v218 = vadd.f32 %v216, %v217
  %v219 = vrot.slane %v218, 4
  %v220 = vadd.f32 %v218, %v219
  %v221 = vrot.slane %v220, 2
  %v222 = vadd.f32 %v220, %v221
  %v223 = vrot.slane %v222, 1
  %v224 = vadd.f32 %v222, %v223
  %v225 = vsel %vm188, %v186, 0.0
  %v226 = vsel %vm188, %v187, 0.0
  %v227 = vadd.f32 %v225, %v226
  %v228 = vrot.slane %v227, 4
  %v229 = vadd.f32 %v227, %v228
  %v230 = vrot.slane %v229, 2
  %v231 = vadd.f32 %v229, %v230
  %v232 = vrot.slane %v231, 1
  %v233 = vadd.f32 %v231, %v232
  %vm239 = vcmask 1041409
  %v240 = vsel %vm239, %v206, %v197
  %vm241 = vcmask 1042434
  %v242 = vsel %vm241, %v215, %v240
  %vm243 = vcmask 1043459
  %v244 = vsel %vm243, %v224, %v242
  %vm245 = vcmask 1044484
  %v246 = vsel %vm245, %v233, %v244
  %vm248 = vcmask 61440
  %249 = vst.msk [vmem:[%s2] sm:$0x1f] %vm248, %v246
  // Predicated region
  $region10: #{model1d_forward.1} parent=0 // pred_check
    _
  $region11: #{model1d_forward.1} parent=0 // pred_check_branch
    %251 = sbr.rel (0) target = $region13
  $region12: #{model1d_forward.1} parent=0 // pred_region
    _
  $region13: #{model1d_forward.1} parent=0 // pred_fallthru
    _
  // Predicated region
  $region14: #{model1d_forward.1} parent=0 // pred_check
    _
  $region15: #{model1d_forward.1} parent=0 // pred_check_branch
    %253 = sbr.rel (0) target = $region17
  $region16: #{model1d_forward.1} parent=0 // pred_region
    _
  $region17: #{model1d_forward.1} parent=0 // pred_fallthru
    _

</llo_original>
